<compile_context>
chip_gen: v7x
topology: tpu7x:2x2x1
jax: 0.10.0
libtpu: 0.0.40
codegen_flags: <defaults>
</compile_context>

<pallas_src>
import functools

import jax
import jax.numpy as jnp
from jax.experimental import pallas as pl
from jax.experimental.pallas import tpu as pltpu


_SQRT_2_OVER_PI = 0.7978845608028654


def _gelu(x):
    # tanh-approximate GELU (EUP tanh path; lowers cleanly in Mosaic).
    # TODO(synk): switch to erf-based GELU if exact parity with PyTorch
    # nn.GELU() default (erf) is required; difference is ~1e-3 worst case.
    return 0.5 * x * (1.0 + jnp.tanh(_SQRT_2_OVER_PI * (x + 0.044715 * x * x * x)))


def _fused_cascade_kernel(*refs, num_stages):
    """Whole bottom-up cascade for one lane-block of B*C columns.

    refs layout:
      seasons   : num_stages+1 refs, season i as (T_i, nb)
      params    : num_stages * (w1 (T_n,T_i), b1 (T_n,1) f32,
                                w2 (T_n,T_n), b2 (T_n,1) f32)
      outputs   : num_stages refs, out_high at scale i+1 as (T_{i+1}, nb)
    """
    n_seasons = num_stages + 1
    season_refs = refs[:n_seasons]
    param_refs = refs[n_seasons:n_seasons + 4 * num_stages]
    out_refs = refs[n_seasons + 4 * num_stages:]

    x = season_refs[0][...]                                   # (T_0, nb)
    for i in range(num_stages):                               # static, small
        w1 = param_refs[4 * i][...]
        b1 = param_refs[4 * i + 1][...]                       # (T_n, 1) f32
        w2 = param_refs[4 * i + 2][...]
        b2 = param_refs[4 * i + 3][...]                       # (T_n, 1) f32

        h = jnp.dot(w1, x, preferred_element_type=jnp.float32) + b1
        h = _gelu(h)
        y = jnp.dot(w2, h.astype(w2.dtype),
                    preferred_element_type=jnp.float32) + b2  # (T_n, nb) f32

        out = season_refs[i + 1][...].astype(jnp.float32) + y
        out_refs[i][...] = out.astype(out_refs[i].dtype)
        x = out.astype(x.dtype)                               # next out_high


def _min_parallel_steps():
    """Only v7x (2 TensorCores/chip) benefits from >=2 parallel grid steps."""
    try:
        kind = jax.devices()[0].device_kind.lower()
    except Exception:
        return 1
    return 2 if "v7" in kind else 1


def _pick_lane_block(n_pad, per_col_bytes, const_bytes, min_steps,
                     budget_bytes=28 << 20):
    """Largest multiple-of-128 divisor of n_pad whose double-buffered block
    (data + constant weights) fits the budget; keep >= min_steps grid steps
    when the padded lane extent allows it."""
    candidates = [c for c in range(128, n_pad + 1, 128) if n_pad % c == 0]
    best = candidates[0]
    for c in candidates:
        if n_pad // c < min_steps and n_pad >= 128 * min_steps:
            continue
        if 2 * per_col_bytes * c + 2 * const_bytes <= budget_bytes:
            best = max(best, c)
    return best


def multi_scale_season_mixing(season_list, params):
    """JAX/Pallas equivalent of MultiScaleSeasonMixing.forward.

    season_list[i]: (B, C, T_i) with T_i = seq_len // window**i (PyTorch layout).
    params[i]: (w1, b1, w2, b2) of down_sampling_layers[i]
               with w1: (T_{i+1}, T_i), b1: (T_{i+1},),
                    w2: (T_{i+1}, T_{i+1}), b2: (T_{i+1},).
    Returns list of (B, T_i, C) arrays (the module's permuted outputs).
    """
    num_stages = len(season_list) - 1
    B, C, _ = season_list[0].shape
    dtype = season_list[0].dtype

    outs = [jnp.transpose(season_list[0], (0, 2, 1))]   # out_season_list[0]
    if num_stages == 0:
        return outs

    lengths = [s.shape[2] for s in season_list]
    N = B * C
    n_pad = ((N + 127) // 128) * 128                    # lane-dense last dim

    # (B, C, T) -> (T, B*C), zero-padded along lanes to a multiple of 128.
    def fold(s):
        T = s.shape[2]
        f = jnp.transpose(s, (2, 0, 1)).reshape(T, N)
        if n_pad != N:
            f = jnp.pad(f, ((0, 0), (0, n_pad - N)))
        return f

    seasons_tn = [fold(s) for s in season_list]

    # Flatten per-stage params; weights in the working dtype (bf16 inputs run
    # the MXU at full rate), biases in f32 (added to the f32 accumulator).
    flat_params = []
    const_bytes = 0
    for i in range(num_stages):
        w1, b1, w2, b2 = params[i]
        Tn, Ti = lengths[i + 1], lengths[i]
        assert w1.shape == (Tn, Ti) and w2.shape == (Tn, Tn)
        w1 = jnp.asarray(w1, dtype)
        w2 = jnp.asarray(w2, dtype)
        b1 = jnp.asarray(b1, jnp.float32).reshape(Tn, 1)
        b2 = jnp.asarray(b2, jnp.float32).reshape(Tn, 1)
        flat_params += [w1, b1, w2, b2]
        const_bytes += (w1.size + w2.size) * w1.dtype.itemsize
        const_bytes += (b1.size + b2.size) * 4

    itemsize = jnp.dtype(dtype).itemsize
    per_col_bytes = (sum(lengths) + sum(lengths[1:])) * itemsize
    nb = _pick_lane_block(n_pad, per_col_bytes, const_bytes,
                          _min_parallel_steps())
    grid = (n_pad // nb,)

    season_specs = [pl.BlockSpec((T, nb), lambda n: (0, n)) for T in lengths]
    param_specs = []
    for i in range(num_stages):
        Tn, Ti = lengths[i + 1], lengths[i]
        # TODO(synk): mark these constant operands pipeline_mode=pl.Buffered(1)
        # on v7x (64 MiB VMEM) to avoid needless double-buffering of weights.
        param_specs += [
            pl.BlockSpec((Tn, Ti), lambda n: (0, 0)),
            pl.BlockSpec((Tn, 1), lambda n: (0, 0)),
            pl.BlockSpec((Tn, Tn), lambda n: (0, 0)),
            pl.BlockSpec((Tn, 1), lambda n: (0, 0)),
        ]
    out_specs = tuple(
        pl.BlockSpec((T, nb), lambda n: (0, n)) for T in lengths[1:])
    out_shape = tuple(
        jax.ShapeDtypeStruct((T, n_pad), dtype) for T in lengths[1:])

    need = 2 * per_col_bytes * nb + 2 * const_bytes + (1 << 20)
    vmem_limit = int(min(max(32 << 20, need), 48 << 20))

    kernel = functools.partial(_fused_cascade_kernel, num_stages=num_stages)
    outs_tn = pl.pallas_call(
        kernel,
        out_shape=out_shape,
        grid=grid,
        in_specs=season_specs + param_specs,
        out_specs=out_specs,
        compiler_params=pltpu.CompilerParams(
            dimension_semantics=("parallel",),
            vmem_limit_bytes=vmem_limit,
        ),
    )(*seasons_tn, *flat_params)

    # (T, n_pad) -> (B, T, C): strip lane padding, unfold batch/channels.
    for o in outs_tn:
        T = o.shape[0]
        o = o[:, :N].reshape(T, B, C)
        outs.append(jnp.transpose(o, (1, 0, 2)))
    return outs


def _reference(season_list, params):
    """Pure-JAX mirror of the PyTorch forward (same GELU approximation)."""
    n = len(season_list)
    out_high = season_list[0]           # (B, C, T_0)
    out_low = season_list[1]            # (B, C, T_1)
    outs = [jnp.transpose(out_high, (0, 2, 1))]
    for i in range(n - 1):
        w1, b1, w2, b2 = params[i]
        h = jnp.einsum("bct,ot->bco", out_high, w1) + b1
        h = _gelu(h)
        out_low_res = jnp.einsum("bco,po->bcp", h, w2) + b2
        out_low = out_low + out_low_res
        out_high = out_low
        if i + 2 <= n - 1:
            out_low = season_list[i + 2]
        outs.append(jnp.transpose(out_high, (0, 2, 1)))
    return outs


if __name__ == "__main__":
    # Small deterministic config: B=2, d_model=32, seq_len=64, window=2,
    # down_sampling_layers=2  ->  season lengths [64, 32, 16].
    B, C = 2, 32
    seq_len, window, layers = 64, 2, 2
    lengths = [seq_len // window ** i for i in range(layers + 1)]

    key = jax.random.PRNGKey(0)

    season_list = []
    for i, T in enumerate(lengths):
        season_list.append(
            jax.random.normal(jax.random.fold_in(key, i), (B, C, T),
                              dtype=jnp.float32))

    params = []
    for i in range(layers):
        Ti, Tn = lengths[i], lengths[i + 1]
        kw1, kb1, kw2, kb2 = jax.random.split(jax.random.fold_in(key, 100 + i), 4)
        w1 = jax.random.normal(kw1, (Tn, Ti), jnp.float32) / jnp.sqrt(Ti)
        b1 = 0.1 * jax.random.normal(kb1, (Tn,), jnp.float32)
        w2 = jax.random.normal(kw2, (Tn, Tn), jnp.float32) / jnp.sqrt(Tn)
        b2 = 0.1 * jax.random.normal(kb2, (Tn,), jnp.float32)
        params.append((w1, b1, w2, b2))

    outs = multi_scale_season_mixing(season_list, params)
    outs = jax.block_until_ready(outs)

    refs = _reference(season_list, params)
    assert len(outs) == len(refs)
    for o, r in zip(outs, refs):
        assert o.shape == r.shape, (o.shape, r.shape)
        err = float(jnp.max(jnp.abs(o - r)))
        assert jnp.allclose(o, r, atol=1e-4, rtol=1e-4), err

    print("KERNEL_OK")
</pallas_src>

<mosaic_0001>
module attributes {stable_mosaic.version = 11 : i64} {
  func.func @_fused_cascade_kernel(%arg0: i32, %arg1: memref<64x128xf32, #tpu.memory_space<vmem>>, %arg2: memref<32x128xf32, #tpu.memory_space<vmem>>, %arg3: memref<16x128xf32, #tpu.memory_space<vmem>>, %arg4: memref<32x64xf32, #tpu.memory_space<vmem>>, %arg5: memref<32x1xf32, #tpu.memory_space<vmem>>, %arg6: memref<32x32xf32, #tpu.memory_space<vmem>>, %arg7: memref<32x1xf32, #tpu.memory_space<vmem>>, %arg8: memref<16x32xf32, #tpu.memory_space<vmem>>, %arg9: memref<16x1xf32, #tpu.memory_space<vmem>>, %arg10: memref<16x16xf32, #tpu.memory_space<vmem>>, %arg11: memref<16x1xf32, #tpu.memory_space<vmem>>, %arg12: memref<32x128xf32, #tpu.memory_space<vmem>>, %arg13: memref<16x128xf32, #tpu.memory_space<vmem>>) attributes {dimension_semantics = [#tpu.dimension_semantics<parallel>], iteration_bounds = array<i64: 1>, scalar_prefetch = 0 : i64, scratch_operands = 0 : i64, tpu.core_type = #tpu.core_type<tc>, window_params = [{transform_indices = @transform_0, window_bounds = array<i64: 64, 128>}, {transform_indices = @transform_1, window_bounds = array<i64: 32, 128>}, {transform_indices = @transform_2, window_bounds = array<i64: 16, 128>}, {pipeline_mode = #tpu.pipeline_mode<synchronous>, transform_indices = @transform_3, window_bounds = array<i64: 32, 64>}, {pipeline_mode = #tpu.pipeline_mode<synchronous>, transform_indices = @transform_4, window_bounds = array<i64: 32, 1>}, {pipeline_mode = #tpu.pipeline_mode<synchronous>, transform_indices = @transform_5, window_bounds = array<i64: 32, 32>}, {pipeline_mode = #tpu.pipeline_mode<synchronous>, transform_indices = @transform_6, window_bounds = array<i64: 32, 1>}, {pipeline_mode = #tpu.pipeline_mode<synchronous>, transform_indices = @transform_7, window_bounds = array<i64: 16, 32>}, {pipeline_mode = #tpu.pipeline_mode<synchronous>, transform_indices = @transform_8, window_bounds = array<i64: 16, 1>}, {pipeline_mode = #tpu.pipeline_mode<synchronous>, transform_indices = @transform_9, window_bounds = array<i64: 16, 16>}, {pipeline_mode = #tpu.pipeline_mode<synchronous>, transform_indices = @transform_10, window_bounds = array<i64: 16, 1>}, {transform_indices = @transform_11, window_bounds = array<i64: 32, 128>}, {transform_indices = @transform_12, window_bounds = array<i64: 16, 128>}]} {
    %c0 = arith.constant 0 : index
    %c0_0 = arith.constant 0 : index
    %0 = vector.load %arg1[%c0, %c0_0] : memref<64x128xf32, #tpu.memory_space<vmem>>, vector<64x128xf32>
    %c0_1 = arith.constant 0 : index
    %c0_2 = arith.constant 0 : index
    %1 = vector.load %arg4[%c0_1, %c0_2] : memref<32x64xf32, #tpu.memory_space<vmem>>, vector<32x64xf32>
    %c0_3 = arith.constant 0 : index
    %c0_4 = arith.constant 0 : index
    %2 = vector.load %arg5[%c0_3, %c0_4] : memref<32x1xf32, #tpu.memory_space<vmem>>, vector<32x1xf32>
    %c0_5 = arith.constant 0 : index
    %c0_6 = arith.constant 0 : index
    %3 = vector.load %arg6[%c0_5, %c0_6] : memref<32x32xf32, #tpu.memory_space<vmem>>, vector<32x32xf32>
    %c0_7 = arith.constant 0 : index
    %c0_8 = arith.constant 0 : index
    %4 = vector.load %arg7[%c0_7, %c0_8] : memref<32x1xf32, #tpu.memory_space<vmem>>, vector<32x1xf32>
    %cst = arith.constant dense<0.000000e+00> : vector<32x128xf32>
    %5 = tpu.matmul %1, %0, %cst {dimension_numbers = #tpu.dot_dimension_numbers<[1], [0], [0], [1], [0, 0, 1, 1], [], []>} : vector<32x64xf32>, vector<64x128xf32>, vector<32x128xf32> -> vector<32x128xf32>
    %6 = vector.broadcast %2 : vector<32x1xf32> to vector<32x128xf32>
    %7 = arith.addf %5, %6 : vector<32x128xf32>
    %cst_9 = arith.constant 5.000000e-01 : f32
    %8 = vector.broadcast %cst_9 : f32 to vector<32x128xf32>
    %9 = arith.mulf %8, %7 : vector<32x128xf32>
    %cst_10 = arith.constant 4.471500e-02 : f32
    %10 = vector.broadcast %cst_10 : f32 to vector<32x128xf32>
    %11 = arith.mulf %10, %7 : vector<32x128xf32>
    %12 = arith.mulf %11, %7 : vector<32x128xf32>
    %13 = arith.mulf %12, %7 : vector<32x128xf32>
    %14 = arith.addf %7, %13 : vector<32x128xf32>
    %cst_11 = arith.constant 0.797884583 : f32
    %15 = vector.broadcast %cst_11 : f32 to vector<32x128xf32>
    %16 = arith.mulf %15, %14 : vector<32x128xf32>
    %17 = math.tanh %16 : vector<32x128xf32>
    %cst_12 = arith.constant 1.000000e+00 : f32
    %18 = vector.broadcast %cst_12 : f32 to vector<32x128xf32>
    %19 = arith.addf %18, %17 : vector<32x128xf32>
    %20 = arith.mulf %9, %19 : vector<32x128xf32>
    %cst_13 = arith.constant dense<0.000000e+00> : vector<32x128xf32>
    %21 = tpu.matmul %3, %20, %cst_13 {dimension_numbers = #tpu.dot_dimension_numbers<[1], [0], [0], [1], [0, 0, 1, 1], [], []>} : vector<32x32xf32>, vector<32x128xf32>, vector<32x128xf32> -> vector<32x128xf32>
    %22 = vector.broadcast %4 : vector<32x1xf32> to vector<32x128xf32>
    %23 = arith.addf %21, %22 : vector<32x128xf32>
    %c0_14 = arith.constant 0 : index
    %c0_15 = arith.constant 0 : index
    %24 = vector.load %arg2[%c0_14, %c0_15] : memref<32x128xf32, #tpu.memory_space<vmem>>, vector<32x128xf32>
    %25 = arith.addf %24, %23 : vector<32x128xf32>
    %c0_16 = arith.constant 0 : index
    %c0_17 = arith.constant 0 : index
    %26 = vector.load %arg12[%c0_16, %c0_17] : memref<32x128xf32, #tpu.memory_space<vmem>>, vector<32x128xf32>
    tpu.vector_store %arg12[%c0_16, %c0_17], %25 {strides = array<i32>} : memref<32x128xf32, #tpu.memory_space<vmem>>, vector<32x128xf32>,
    %c0_18 = arith.constant 0 : index
    %c0_19 = arith.constant 0 : index
    %27 = vector.load %arg8[%c0_18, %c0_19] : memref<16x32xf32, #tpu.memory_space<vmem>>, vector<16x32xf32>
    %c0_20 = arith.constant 0 : index
    %c0_21 = arith.constant 0 : index
    %28 = vector.load %arg9[%c0_20, %c0_21] : memref<16x1xf32, #tpu.memory_space<vmem>>, vector<16x1xf32>
    %c0_22 = arith.constant 0 : index
    %c0_23 = arith.constant 0 : index
    %29 = vector.load %arg10[%c0_22, %c0_23] : memref<16x16xf32, #tpu.memory_space<vmem>>, vector<16x16xf32>
    %c0_24 = arith.constant 0 : index
    %c0_25 = arith.constant 0 : index
    %30 = vector.load %arg11[%c0_24, %c0_25] : memref<16x1xf32, #tpu.memory_space<vmem>>, vector<16x1xf32>
    %cst_26 = arith.constant dense<0.000000e+00> : vector<16x128xf32>
    %31 = tpu.matmul %27, %25, %cst_26 {dimension_numbers = #tpu.dot_dimension_numbers<[1], [0], [0], [1], [0, 0, 1, 1], [], []>} : vector<16x32xf32>, vector<32x128xf32>, vector<16x128xf32> -> vector<16x128xf32>
    %32 = vector.broadcast %28 : vector<16x1xf32> to vector<16x128xf32>
    %33 = arith.addf %31, %32 : vector<16x128xf32>
    %cst_27 = arith.constant 5.000000e-01 : f32
    %34 = vector.broadcast %cst_27 : f32 to vector<16x128xf32>
    %35 = arith.mulf %34, %33 : vector<16x128xf32>
    %cst_28 = arith.constant 4.471500e-02 : f32
    %36 = vector.broadcast %cst_28 : f32 to vector<16x128xf32>
    %37 = arith.mulf %36, %33 : vector<16x128xf32>
    %38 = arith.mulf %37, %33 : vector<16x128xf32>
    %39 = arith.mulf %38, %33 : vector<16x128xf32>
    %40 = arith.addf %33, %39 : vector<16x128xf32>
    %cst_29 = arith.constant 0.797884583 : f32
    %41 = vector.broadcast %cst_29 : f32 to vector<16x128xf32>
    %42 = arith.mulf %41, %40 : vector<16x128xf32>
    %43 = math.tanh %42 : vector<16x128xf32>
    %cst_30 = arith.constant 1.000000e+00 : f32
    %44 = vector.broadcast %cst_30 : f32 to vector<16x128xf32>
    %45 = arith.addf %44, %43 : vector<16x128xf32>
    %46 = arith.mulf %35, %45 : vector<16x128xf32>
    %cst_31 = arith.constant dense<0.000000e+00> : vector<16x128xf32>
    %47 = tpu.matmul %29, %46, %cst_31 {dimension_numbers = #tpu.dot_dimension_numbers<[1], [0], [0], [1], [0, 0, 1, 1], [], []>} : vector<16x16xf32>, vector<16x128xf32>, vector<16x128xf32> -> vector<16x128xf32>
    %48 = vector.broadcast %30 : vector<16x1xf32> to vector<16x128xf32>
    %49 = arith.addf %47, %48 : vector<16x128xf32>
    %c0_32 = arith.constant 0 : index
    %c0_33 = arith.constant 0 : index
    %50 = vector.load %arg3[%c0_32, %c0_33] : memref<16x128xf32, #tpu.memory_space<vmem>>, vector<16x128xf32>
    %51 = arith.addf %50, %49 : vector<16x128xf32>
    %c0_34 = arith.constant 0 : index
    %c0_35 = arith.constant 0 : index
    %52 = vector.load %arg13[%c0_34, %c0_35] : memref<16x128xf32, #tpu.memory_space<vmem>>, vector<16x128xf32>
    tpu.vector_store %arg13[%c0_34, %c0_35], %51 {strides = array<i32>} : memref<16x128xf32, #tpu.memory_space<vmem>>, vector<16x128xf32>,
    return
  }
  func.func @transform_0(%arg0: i32) -> (i32, i32) {
    %c0_i32 = arith.constant 0 : i32
    %c0_i32_0 = arith.constant 0 : i32
    return %c0_i32, %arg0 : i32, i32
  }
  func.func @transform_1(%arg0: i32) -> (i32, i32) {
    %c0_i32 = arith.constant 0 : i32
    %c0_i32_0 = arith.constant 0 : i32
    return %c0_i32, %arg0 : i32, i32
  }
  func.func @transform_2(%arg0: i32) -> (i32, i32) {
    %c0_i32 = arith.constant 0 : i32
    %c0_i32_0 = arith.constant 0 : i32
    return %c0_i32, %arg0 : i32, i32
  }
  func.func @transform_3(%arg0: i32) -> (i32, i32) {
    %c0_i32 = arith.constant 0 : i32
    %c0_i32_0 = arith.constant 0 : i32
    %c0_i32_1 = arith.constant 0 : i32
    return %c0_i32, %c0_i32_0 : i32, i32
  }
  func.func @transform_4(%arg0: i32) -> (i32, i32) {
    %c0_i32 = arith.constant 0 : i32
    %c0_i32_0 = arith.constant 0 : i32
    %c0_i32_1 = arith.constant 0 : i32
    return %c0_i32, %c0_i32_0 : i32, i32
  }
  func.func @transform_5(%arg0: i32) -> (i32, i32) {
    %c0_i32 = arith.constant 0 : i32
    %c0_i32_0 = arith.constant 0 : i32
    %c0_i32_1 = arith.constant 0 : i32
    return %c0_i32, %c0_i32_0 : i32, i32
  }
  func.func @transform_6(%arg0: i32) -> (i32, i32) {
    %c0_i32 = arith.constant 0 : i32
    %c0_i32_0 = arith.constant 0 : i32
    %c0_i32_1 = arith.constant 0 : i32
    return %c0_i32, %c0_i32_0 : i32, i32
  }
  func.func @transform_7(%arg0: i32) -> (i32, i32) {
    %c0_i32 = arith.constant 0 : i32
    %c0_i32_0 = arith.constant 0 : i32
    %c0_i32_1 = arith.constant 0 : i32
    return %c0_i32, %c0_i32_0 : i32, i32
  }
  func.func @transform_8(%arg0: i32) -> (i32, i32) {
    %c0_i32 = arith.constant 0 : i32
    %c0_i32_0 = arith.constant 0 : i32
    %c0_i32_1 = arith.constant 0 : i32
    return %c0_i32, %c0_i32_0 : i32, i32
  }
  func.func @transform_9(%arg0: i32) -> (i32, i32) {
    %c0_i32 = arith.constant 0 : i32
    %c0_i32_0 = arith.constant 0 : i32
    %c0_i32_1 = arith.constant 0 : i32
    return %c0_i32, %c0_i32_0 : i32, i32
  }
  func.func @transform_10(%arg0: i32) -> (i32, i32) {
    %c0_i32 = arith.constant 0 : i32
    %c0_i32_0 = arith.constant 0 : i32
    %c0_i32_1 = arith.constant 0 : i32
    return %c0_i32, %c0_i32_0 : i32, i32
  }
  func.func @transform_11(%arg0: i32) -> (i32, i32) {
    %c0_i32 = arith.constant 0 : i32
    %c0_i32_0 = arith.constant 0 : i32
    return %c0_i32, %arg0 : i32, i32
  }
  func.func @transform_12(%arg0: i32) -> (i32, i32) {
    %c0_i32 = arith.constant 0 : i32
    %c0_i32_0 = arith.constant 0 : i32
    return %c0_i32, %arg0 : i32, i32
  }
}

</mosaic_0001>

<llo_original>
// kernel: tpu_custom_call.1
$region0: #{tpu_custom_call.1}
  #allocation0 [shape = 'u32[]', space=smem, size = 0x4, offset = 0x4, fixed_abs, tag = 'smem constant byte address 0x4 - core index']
  #allocation1 [shape = 'u32[144,128]{1,0:T(1,128)}', space=vmem, size = 0x12000, scoped, tag = 'internal scratch']
  %s0 = inlined_call_operand.vmem [shape: f32[64,128], index: 0, kind: input, shape index: {}]
  %s1 = inlined_call_operand.vmem [shape: f32[32,128], index: 1, kind: input, shape index: {}]
  %s2 = inlined_call_operand.hbm [shape: f32[16,128], index: 2, kind: input, shape index: {}]
  %s3 = inlined_call_operand.hbm [shape: f32[32,64], index: 3, kind: input, shape index: {}]
  %s4 = inlined_call_operand.vmem [shape: f32[32,1], index: 4, kind: input, shape index: {}]
  %s5 = inlined_call_operand.hbm [shape: f32[32,32], index: 5, kind: input, shape index: {}]
  %s6 = inlined_call_operand.vmem [shape: f32[32,1], index: 6, kind: input, shape index: {}]
  %s7 = inlined_call_operand.vmem [shape: f32[16,32], index: 7, kind: input, shape index: {}]
  %s8 = inlined_call_operand.vmem [shape: f32[16,1], index: 8, kind: input, shape index: {}]
  %s9 = inlined_call_operand.vmem [shape: f32[16,16], index: 9, kind: input, shape index: {}]
  %s10 = inlined_call_operand.vmem [shape: f32[16,1], index: 10, kind: input, shape index: {}]
  %s11 = inlined_call_operand.hbm [shape: f32[32,128], index: 11, kind: output, shape index: {0}]
  %s12 = inlined_call_operand.hbm [shape: f32[16,128], index: 12, kind: output, shape index: {1}]
  %13 = xla_tuple %s11, %s12
  %s14 = sld [smem:[#allocation0]]
  $region74: #{tpu_custom_call.1} parent=0
    _
  %s16 = ssub.s32 1, %s14
  %s17 = scalar_select 0, %s16, %s14
  $region1: #{tpu_custom_call.1} parent=0
    #allocation2 [shape = 'u8[8192]{0}', space=vmem, size = 0x2000, scoped, tag = 'input window, operand 2, single buffered']
    #allocation3 [shape = 's32[1]{0}', space=sflag, size = 0x4, scoped, tag = 'scoped memory for tpu_custom_call.1']
    #allocation4 [shape = 's32[1]{0}', space=sflag, size = 0x4, scoped, tag = 'scoped memory for tpu_custom_call.1']
    #allocation5 [shape = 'u8[16384]{0}', space=vmem, size = 0x4000, scoped, tag = 'input window, operand 3, single buffered']
    #allocation6 [shape = 's32[1]{0}', space=sflag, size = 0x4, scoped, tag = 'scoped memory for tpu_custom_call.1']
    #allocation7 [shape = 'u8[16384]{0}', space=vmem, size = 0x4000, scoped, tag = 'input window, operand 5, single buffered']
    #allocation8 [shape = 'u8[16384]{0}', space=vmem, size = 0x4000, scoped, tag = 'output window, operand 0, single buffered']
    #allocation9 [shape = 'u8[8192]{0}', space=vmem, size = 0x2000, scoped, tag = 'output window, operand 1, single buffered']
    #allocation10 [shape = 's32[1]{0}', space=sflag, size = 0x4, scoped, tag = 'scoped memory for tpu_custom_call.1']
    %18 = vsyncpa [#allocation3], 0
    %19 = vsyncpa [#allocation6], 0
    %20 = vsyncpa [#allocation4], 0
    %21 = vsyncpa [#allocation10], 0
    // Predicated region
    $region2: #{tpu_custom_call.1} parent=1 // pred_check
      _
    $region3: #{tpu_custom_call.1} parent=1 // pred_check_branch
      %23 = sbr.rel (0) target = $region5
    $region4: #{tpu_custom_call.1} parent=1 // pred_region
      _
    $region5: #{tpu_custom_call.1} parent=1 // pred_fallthru
      _
    // Predicated region
    $region6: #{tpu_custom_call.1} parent=1 // pred_check
      _
    $region7: #{tpu_custom_call.1} parent=1 // pred_check_branch
      %25 = sbr.rel (0) target = $region9
    $region8: #{tpu_custom_call.1} parent=1 // pred_region
      _
    $region9: #{tpu_custom_call.1} parent=1 // pred_fallthru
      _
    // Predicated region
    $region10: #{tpu_custom_call.1} parent=1 // pred_check
      _
    $region11: #{tpu_custom_call.1} parent=1 // pred_check_branch
      %27 = sbr.rel (0) target = $region13
    $region12: #{tpu_custom_call.1} parent=1 // pred_region
      %s29 = ssub.s32 256, 256
      %30 = vsyncadd [#allocation3], %s29
      %s31 = sshll.u32 [#allocation2], 4
      %s32 = int_to_ptr.vmem [resolvable:$true] %s31
      %37 = dma.hbm_to_vmem [thread:$0]  %s2, 256, %s32, [#allocation3], 128, 128, 8
    $region13: #{tpu_custom_call.1} parent=1 // pred_fallthru
      _
    // Predicated region
    $region14: #{tpu_custom_call.1} parent=1 // pred_check
      _
    $region15: #{tpu_custom_call.1} parent=1 // pred_check_branch
      %39 = sbr.rel (0) target = $region17
    $region16: #{tpu_custom_call.1} parent=1 // pred_region
      %s41 = ssub.s32 512, 512
      %42 = vsyncadd [#allocation6], %s41
      %s43 = sshll.u32 [#allocation5], 4
      %s44 = int_to_ptr.vmem [resolvable:$true] %s43
      %49 = dma.hbm_to_vmem [thread:$0]  %s3, 512, %s44, [#allocation6], 128, 128, 8
    $region17: #{tpu_custom_call.1} parent=1 // pred_fallthru
      _
    // Predicated region
    $region18: #{tpu_custom_call.1} parent=1 // pred_check
      _
    $region19: #{tpu_custom_call.1} parent=1 // pred_check_branch
      %51 = sbr.rel (0) target = $region21
    $region20: #{tpu_custom_call.1} parent=1 // pred_region
      _
    $region21: #{tpu_custom_call.1} parent=1 // pred_fallthru
      _
    // Predicated region
    $region22: #{tpu_custom_call.1} parent=1 // pred_check
      _
    $region23: #{tpu_custom_call.1} parent=1 // pred_check_branch
      %53 = sbr.rel (0) target = $region25
    $region24: #{tpu_custom_call.1} parent=1 // pred_region
      %s55 = ssub.s32 512, 512
      %56 = vsyncadd [#allocation6], %s55
      %s57 = sshll.u32 [#allocation7], 4
      %s58 = int_to_ptr.vmem [resolvable:$true] %s57
      %63 = dma.hbm_to_vmem [thread:$0]  %s5, 512, %s58, [#allocation6], 128, 128, 8
    $region25: #{tpu_custom_call.1} parent=1 // pred_fallthru
      _
    // Predicated region
    $region26: #{tpu_custom_call.1} parent=1 // pred_check
      _
    $region27: #{tpu_custom_call.1} parent=1 // pred_check_branch
      %65 = sbr.rel (0) target = $region29
    $region28: #{tpu_custom_call.1} parent=1 // pred_region
      _
    $region29: #{tpu_custom_call.1} parent=1 // pred_fallthru
      _
    // Predicated region
    $region30: #{tpu_custom_call.1} parent=1 // pred_check
      _
    $region31: #{tpu_custom_call.1} parent=1 // pred_check_branch
      %67 = sbr.rel (0) target = $region33
    $region32: #{tpu_custom_call.1} parent=1 // pred_region
      _
    $region33: #{tpu_custom_call.1} parent=1 // pred_fallthru
      _
    // Predicated region
    $region34: #{tpu_custom_call.1} parent=1 // pred_check
      _
    $region35: #{tpu_custom_call.1} parent=1 // pred_check_branch
      %69 = sbr.rel (0) target = $region37
    $region36: #{tpu_custom_call.1} parent=1 // pred_region
      _
    $region37: #{tpu_custom_call.1} parent=1 // pred_fallthru
      _
    // Predicated region
    $region38: #{tpu_custom_call.1} parent=1 // pred_check
      _
    $region39: #{tpu_custom_call.1} parent=1 // pred_check_branch
      %71 = sbr.rel (0) target = $region41
    $region40: #{tpu_custom_call.1} parent=1 // pred_region
      _
    $region41: #{tpu_custom_call.1} parent=1 // pred_fallthru
      _
    // Predicated region
    $region42: #{tpu_custom_call.1} parent=1 // pred_check
      _
    $region43: #{tpu_custom_call.1} parent=1 // pred_check_branch
      %73 = sbr.rel (0) target = $region45
    $region44: #{tpu_custom_call.1} parent=1 // pred_region
      _
    $region45: #{tpu_custom_call.1} parent=1 // pred_fallthru
      _
    // Predicated region
    $region46: #{tpu_custom_call.1} parent=1 // pred_check
      _
    $region47: #{tpu_custom_call.1} parent=1 // pred_check_branch
      %75 = sbr.rel (0) target = $region49
    $region48: #{tpu_custom_call.1} parent=1 // pred_region
      %76 = dma.done [#allocation3], 256
    $region49: #{tpu_custom_call.1} parent=1 // pred_fallthru
      _
    // Predicated region
    $region50: #{tpu_custom_call.1} parent=1 // pred_check
      _
    $region51: #{tpu_custom_call.1} parent=1 // pred_check_branch
      %78 = sbr.rel (0) target = $region53
    $region52: #{tpu_custom_call.1} parent=1 // pred_region
      %79 = dma.done [#allocation6], 512
    $region53: #{tpu_custom_call.1} parent=1 // pred_fallthru
      _
    // Predicated region
    $region54: #{tpu_custom_call.1} parent=1 // pred_check
      _
    $region55: #{tpu_custom_call.1} parent=1 // pred_check_branch
      %81 = sbr.rel (0) target = $region57
    $region56: #{tpu_custom_call.1} parent=1 // pred_region
      %82 = dma.done [#allocation6], 512
    $region57: #{tpu_custom_call.1} parent=1 // pred_fallthru
      _
    %v83 = vld [vmem:[%s0] sm:$0xff]
    %v84 = vld [vmem:[%s0 + $0x8] sm:$0xff]
    %v85 = vld [vmem:[%s0 + $0x10] sm:$0xff]
    %v86 = vld [vmem:[%s0 + $0x18] sm:$0xff]
    %v87 = vld [vmem:[%s0 + $0x20] sm:$0xff]
    %v88 = vld [vmem:[%s0 + $0x28] sm:$0xff]
    %v89 = vld [vmem:[%s0 + $0x30] sm:$0xff]
    %v90 = vld [vmem:[%s0 + $0x38] sm:$0xff]
    %v91 = vld [vmem:[#allocation5] sm:$0xff]
    %v92 = vld [vmem:[#allocation5 + $0x8] sm:$0xff]
    %v93 = vld [vmem:[#allocation5 + $0x10] sm:$0xff]
    %v94 = vld [vmem:[#allocation5 + $0x18] sm:$0xff]
    %v95 = vld [vmem:[%s4] sm:$0xff]
    %v96 = vld [vmem:[%s4 + $0x8] sm:$0xff]
    %v97 = vld [vmem:[%s4 + $0x10] sm:$0xff]
    %v98 = vld [vmem:[%s4 + $0x18] sm:$0xff]
    %v99 = vld [vmem:[#allocation7] sm:$0xff]
    %v100 = vld [vmem:[#allocation7 + $0x8] sm:$0xff]
    %v101 = vld [vmem:[#allocation7 + $0x10] sm:$0xff]
    %v102 = vld [vmem:[#allocation7 + $0x18] sm:$0xff]
    %v103 = vld [vmem:[%s6] sm:$0xff]
    %v104 = vld [vmem:[%s6 + $0x8] sm:$0xff]
    %v105 = vld [vmem:[%s6 + $0x10] sm:$0xff]
    %v106 = vld [vmem:[%s6 + $0x18] sm:$0xff]
    %108 = vset.pattern.permute.xlu0 0
    %109 = vperm.xlu0 %108, %v95
    %v110 = vpop.permute.xlu0 %109
    %113 = vset.pattern.permute.xlu0 0
    %114 = vperm.xlu0 %113, %v96
    %v115 = vpop.permute.xlu0 %114
    %118 = vset.pattern.permute.xlu0 0
    %119 = vperm.xlu0 %118, %v97
    %v120 = vpop.permute.xlu0 %119
    %123 = vset.pattern.permute.xlu0 0
    %124 = vperm.xlu0 %123, %v98
    %v125 = vpop.permute.xlu0 %124
    %vm127 = vcmask 523264
    %v129 = vsel %vm127, %v91, 0
    %v132 = vsel %vm127, %v92, 0
    %v135 = vsel %vm127, %v93, 0
    %v138 = vsel %vm127, %v94, 0
    %140 = vmatprep.subr.mxu0 0.0
    %141 = vmatpush1.msra.mxu0 %v83
    %142 = vmatprep.subr.mxu0 0.0
    %143 = vmatpush1.msra.mxu0 %v84
    %144 = vmatprep.subr.mxu0 0.0
    %145 = vmatpush1.msra.mxu0 %v85
    %146 = vmatprep.subr.mxu0 0.0
    %147 = vmatpush1.msra.mxu0 %v86
    %148 = vmatprep.subr.mxu0 0.0
    %149 = vmatpush1.msra.mxu0 %v87
    %150 = vmatprep.subr.mxu0 0.0
    %151 = vmatpush1.msra.mxu0 %v88
    %152 = vmatprep.subr.mxu0 0.0
    %153 = vmatpush1.msra.mxu0 %v89
    %154 = vmatprep.subr.mxu0 0.0
    %155 = vmatpush1.msra.mxu0 %v90
    %156 = vmatprep.subr.mxu0 0.0
    %157 = vmatpush1.msra.mxu0 0.0
    %158 = vmatprep.subr.mxu0 0.0
    %159 = vmatpush1.msra.mxu0 0.0
    %160 = vmatprep.subr.mxu0 0.0
    %161 = vmatpush1.msra.mxu0 0.0
    %162 = vmatprep.subr.mxu0 0.0
    %163 = vmatpush1.msra.mxu0 0.0
    %164 = vmatprep.subr.mxu0 0.0
    %165 = vmatpush1.msra.mxu0 0.0
    %166 = vmatprep.subr.mxu0 0.0
    %167 = vmatpush1.msra.mxu0 0.0
    %168 = vmatprep.subr.mxu0 0.0
    %169 = vmatpush1.msra.mxu0 0.0
    %170 = vmatprep.subr.mxu0 0.0
    %171 = vmatpush1.msra.mxu0 0.0
    %172 = vmatprep.subr.mxu0 0.0
    %173 = vmatpush1.msra.mxu0 0.0
    %174 = vmatprep.subr.mxu0 0.0
    %175 = vmatpush1.msra.mxu0 0.0
    %176 = vmatprep.subr.mxu0 0.0
    %177 = vmatpush1.msra.mxu0 0.0
    %178 = vmatprep.subr.mxu0 0.0
    %179 = vmatpush1.msra.mxu0 0.0
    %180 = vmatprep.subr.mxu0 0.0
    %181 = vmatpush1.msra.mxu0 0.0
    %182 = vmatprep.subr.mxu0 0.0
    %183 = vmatpush1.msra.mxu0 0.0
    %184 = vmatprep.subr.mxu0 0.0
    %185 = vmatpush1.msra.mxu0 0.0
    %186 = vmatprep.subr.mxu0 0.0
    %187 = vmatpush1.msra.mxu0 0.0
    %188 = vmatprep.subr.mxu0 0.0
    %189 = vmatpush1.msra.mxu0 0.0
    %190 = vmatprep.subr.mxu0 0.0
    %191 = vmatpush1.msra.mxu0 0.0
    %192 = vmatprep.subr.mxu0 0.0
    %193 = vmatpush1.msra.mxu0 0.0
    %194 = vmatprep.subr.mxu0 0.0
    %195 = vmatpush1.msra.mxu0 0.0
    %196 = vmatprep.subr.mxu0 0.0
    %197 = vmatpush1.msra.mxu0 0.0
    %198 = vmatprep.subr.mxu0 0.0
    %199 = vmatpush1.msra.mxu0 0.0
    %200 = vmatprep.subr.mxu0 0.0
    %201 = vmatpush1.msra.mxu0 0.0
    %202 = vmatprep.subr.mxu0 0.0
    %203 = vmatpush1.msra.mxu0 0.0
    %204 = vmatprep.mubr.f32.mxu0 0.0
    %205 = vmatmul.mubr.f32.gmra.mrb[0].mxu0 %v129
    %v206 = vpop.f32.mrb[0].mxu0
    %v207 = vadd.f32 %v110, %v206
    %v208 = vpop.f32.mrb[0].mxu0
    %209 = vmatprep.mubr.f32.mxu0 0.0
    %210 = vmatmul.mubr.f32.gmra.mrb[0].mxu0 %v132
    %v211 = vpop.f32.mrb[0].mxu0
    %v212 = vadd.f32 %v115, %v211
    %v213 = vpop.f32.mrb[0].mxu0
    %214 = vmatprep.mubr.f32.mxu0 0.0
    %215 = vmatmul.mubr.f32.gmra.mrb[0].mxu0 %v135
    %v216 = vpop.f32.mrb[0].mxu0
    %v217 = vadd.f32 %v120, %v216
    %v218 = vpop.f32.mrb[0].mxu0
    %219 = vmatprep.mubr.f32.mxu0 0.0
    %220 = vmatmul.mubr.f32.gmra.mrb[0].mxu0 %v138
    %v221 = vpop.f32.mrb[0].mxu0
    %v222 = vadd.f32 %v125, %v221
    %v223 = vpop.f32.mrb[0].mxu0
    %224 = vdwg.mxu0
    %v225 = vmul.f32 %v207, 0.5
    %v226 = vmul.f32 %v212, 0.5
    %v227 = vmul.f32 %v217, 0.5
    %v228 = vmul.f32 %v222, 0.5
    %v229 = vmul.f32 %v207, 0.044715
    %v230 = vmul.f32 %v212, 0.044715
    %v231 = vmul.f32 %v217, 0.044715
    %v232 = vmul.f32 %v222, 0.044715
    %v233 = vmul.f32 %v229, %v207
    %v234 = vmul.f32 %v230, %v212
    %v235 = vmul.f32 %v231, %v217
    %v236 = vmul.f32 %v232, %v222
    %v237 = vmul.f32 %v233, %v207
    %v238 = vmul.f32 %v234, %v212
    %v239 = vmul.f32 %v235, %v217
    %v240 = vmul.f32 %v236, %v222
    %v241 = vadd.f32 %v207, %v237
    %v242 = vadd.f32 %v212, %v238
    %v243 = vadd.f32 %v217, %v239
    %v244 = vadd.f32 %v222, %v240
    %v245 = vmul.f32 %v241, 0.7978846
    %v246 = vmul.f32 %v242, 0.7978846
    %v247 = vmul.f32 %v243, 0.7978846
    %v248 = vmul.f32 %v244, 0.7978846
    %v249 = vtanh.pop %v245
    %v250 = vtanh.pop %v246
    %v251 = vtanh.pop %v247
    %v252 = vtanh.pop %v248
    %v253 = vadd.f32 %v249, 1.0
    %v254 = vadd.f32 %v250, 1.0
    %v255 = vadd.f32 %v251, 1.0
    %v256 = vadd.f32 %v252, 1.0
    %v257 = vmul.f32 %v225, %v253
    %v258 = vmul.f32 %v226, %v254
    %v259 = vmul.f32 %v227, %v255
    %v260 = vmul.f32 %v228, %v256
    %262 = vset.pattern.permute.xlu0 0
    %263 = vperm.xlu0 %262, %v103
    %v264 = vpop.permute.xlu0 %263
    %267 = vset.pattern.permute.xlu0 0
    %268 = vperm.xlu0 %267, %v104
    %v269 = vpop.permute.xlu0 %268
    %272 = vset.pattern.permute.xlu0 0
    %273 = vperm.xlu0 %272, %v105
    %v274 = vpop.permute.xlu0 %273
    %277 = vset.pattern.permute.xlu0 0
    %278 = vperm.xlu0 %277, %v106
    %v279 = vpop.permute.xlu0 %278
    %vm281 = vcmask 261120
    %v283 = vsel %vm281, %v99, 0
    %v286 = vsel %vm281, %v100, 0
    %v289 = vsel %vm281, %v101, 0
    %v292 = vsel %vm281, %v102, 0
    %294 = vmatprep.subr.mxu0 0.0
    %295 = vmatpush1.msra.mxu0 %v257
    %296 = vmatprep.subr.mxu0 0.0
    %297 = vmatpush1.msra.mxu0 %v258
    %298 = vmatprep.subr.mxu0 0.0
    %299 = vmatpush1.msra.mxu0 %v259
    %300 = vmatprep.subr.mxu0 0.0
    %301 = vmatpush1.msra.mxu0 %v260
    %302 = vmatprep.subr.mxu0 0.0
    %303 = vmatpush1.msra.mxu0 0.0
    %304 = vmatprep.subr.mxu0 0.0
    %305 = vmatpush1.msra.mxu0 0.0
    %306 = vmatprep.subr.mxu0 0.0
    %307 = vmatpush1.msra.mxu0 0.0
    %308 = vmatprep.subr.mxu0 0.0
    %309 = vmatpush1.msra.mxu0 0.0
    %310 = vmatprep.subr.mxu0 0.0
    %311 = vmatpush1.msra.mxu0 0.0
    %312 = vmatprep.subr.mxu0 0.0
    %313 = vmatpush1.msra.mxu0 0.0
    %314 = vmatprep.subr.mxu0 0.0
    %315 = vmatpush1.msra.mxu0 0.0
    %316 = vmatprep.subr.mxu0 0.0
    %317 = vmatpush1.msra.mxu0 0.0
    %318 = vmatprep.subr.mxu0 0.0
    %319 = vmatpush1.msra.mxu0 0.0
    %320 = vmatprep.subr.mxu0 0.0
    %321 = vmatpush1.msra.mxu0 0.0
    %322 = vmatprep.subr.mxu0 0.0
    %323 = vmatpush1.msra.mxu0 0.0
    %324 = vmatprep.subr.mxu0 0.0
    %325 = vmatpush1.msra.mxu0 0.0
    %326 = vmatprep.subr.mxu0 0.0
    %327 = vmatpush1.msra.mxu0 0.0
    %328 = vmatprep.subr.mxu0 0.0
    %329 = vmatpush1.msra.mxu0 0.0
    %330 = vmatprep.subr.mxu0 0.0
    %331 = vmatpush1.msra.mxu0 0.0
    %332 = vmatprep.subr.mxu0 0.0
    %333 = vmatpush1.msra.mxu0 0.0
    %334 = vmatprep.subr.mxu0 0.0
    %335 = vmatpush1.msra.mxu0 0.0
    %336 = vmatprep.subr.mxu0 0.0
    %337 = vmatpush1.msra.mxu0 0.0
    %338 = vmatprep.subr.mxu0 0.0
    %339 = vmatpush1.msra.mxu0 0.0
    %340 = vmatprep.subr.mxu0 0.0
    %341 = vmatpush1.msra.mxu0 0.0
    %342 = vmatprep.subr.mxu0 0.0
    %343 = vmatpush1.msra.mxu0 0.0
    %344 = vmatprep.subr.mxu0 0.0
    %345 = vmatpush1.msra.mxu0 0.0
    %346 = vmatprep.subr.mxu0 0.0
    %347 = vmatpush1.msra.mxu0 0.0
    %348 = vmatprep.subr.mxu0 0.0
    %349 = vmatpush1.msra.mxu0 0.0
    %350 = vmatprep.subr.mxu0 0.0
    %351 = vmatpush1.msra.mxu0 0.0
    %352 = vmatprep.subr.mxu0 0.0
    %353 = vmatpush1.msra.mxu0 0.0
    %354 = vmatprep.subr.mxu0 0.0
    %355 = vmatpush1.msra.mxu0 0.0
    %356 = vmatprep.subr.mxu0 0.0
    %357 = vmatpush1.msra.mxu0 0.0
    %358 = vmatprep.mubr.f32.mxu0 0.0
    %359 = vmatmul.mubr.f32.gmra.mrb[0].mxu0 %v283
    %v360 = vpop.f32.mrb[0].mxu0
    %v361 = vadd.f32 %v264, %v360
    %v362 = vpop.f32.mrb[0].mxu0
    %363 = vmatprep.mubr.f32.mxu0 0.0
    %364 = vmatmul.mubr.f32.gmra.mrb[0].mxu0 %v286
    %v365 = vpop.f32.mrb[0].mxu0
    %v366 = vadd.f32 %v269, %v365
    %v367 = vpop.f32.mrb[0].mxu0
    %368 = vmatprep.mubr.f32.mxu0 0.0
    %369 = vmatmul.mubr.f32.gmra.mrb[0].mxu0 %v289
    %v370 = vpop.f32.mrb[0].mxu0
    %v371 = vadd.f32 %v274, %v370
    %v372 = vpop.f32.mrb[0].mxu0
    %373 = vmatprep.mubr.f32.mxu0 0.0
    %374 = vmatmul.mubr.f32.gmra.mrb[0].mxu0 %v292
    %v375 = vpop.f32.mrb[0].mxu0
    %v376 = vadd.f32 %v279, %v375
    %v377 = vpop.f32.mrb[0].mxu0
    %378 = vdwg.mxu0
    %v379 = vld [vmem:[%s1] sm:$0xff]
    %v380 = vld [vmem:[%s1 + $0x8] sm:$0xff]
    %v381 = vld [vmem:[%s1 + $0x10] sm:$0xff]
    %v382 = vld [vmem:[%s1 + $0x18] sm:$0xff]
    %v383 = vadd.f32 %v379, %v361
    %v384 = vadd.f32 %v380, %v366
    %v385 = vadd.f32 %v381, %v371
    %v386 = vadd.f32 %v382, %v376
    %387 = vst [vmem:[#allocation8] sm:$0xff] %v383
    %388 = vst [vmem:[#allocation8 + $0x8] sm:$0xff] %v384
    %389 = vst [vmem:[#allocation8 + $0x10] sm:$0xff] %v385
    %390 = vst [vmem:[#allocation8 + $0x18] sm:$0xff] %v386
    %v391 = vld [vmem:[%s7] sm:$0xff]
    %v392 = vld [vmem:[%s7 + $0x8] sm:$0xff]
    %v393 = vld [vmem:[%s8] sm:$0xff]
    %v394 = vld [vmem:[%s8 + $0x8] sm:$0xff]
    %v395 = vld [vmem:[%s9] sm:$0xff]
    %v396 = vld [vmem:[%s9 + $0x8] sm:$0xff]
    %v397 = vld [vmem:[%s10] sm:$0xff]
    %v398 = vld [vmem:[%s10 + $0x8] sm:$0xff]
    %400 = vset.pattern.permute.xlu0 0
    %401 = vperm.xlu0 %400, %v393
    %v402 = vpop.permute.xlu0 %401
    %405 = vset.pattern.permute.xlu0 0
    %406 = vperm.xlu0 %405, %v394
    %v407 = vpop.permute.xlu0 %406
    %v410 = vsel %vm281, %v391, 0
    %v413 = vsel %vm281, %v392, 0
    %415 = vmatprep.subr.mxu0 0.0
    %416 = vmatpush1.msra.mxu0 %v383
    %417 = vmatprep.subr.mxu0 0.0
    %418 = vmatpush1.msra.mxu0 %v384
    %419 = vmatprep.subr.mxu0 0.0
    %420 = vmatpush1.msra.mxu0 %v385
    %421 = vmatprep.subr.mxu0 0.0
    %422 = vmatpush1.msra.mxu0 %v386
    %423 = vmatprep.subr.mxu0 0.0
    %424 = vmatpush1.msra.mxu0 0.0
    %425 = vmatprep.subr.mxu0 0.0
    %426 = vmatpush1.msra.mxu0 0.0
    %427 = vmatprep.subr.mxu0 0.0
    %428 = vmatpush1.msra.mxu0 0.0
    %429 = vmatprep.subr.mxu0 0.0
    %430 = vmatpush1.msra.mxu0 0.0
    %431 = vmatprep.subr.mxu0 0.0
    %432 = vmatpush1.msra.mxu0 0.0
    %433 = vmatprep.subr.mxu0 0.0
    %434 = vmatpush1.msra.mxu0 0.0
    %435 = vmatprep.subr.mxu0 0.0
    %436 = vmatpush1.msra.mxu0 0.0
    %437 = vmatprep.subr.mxu0 0.0
    %438 = vmatpush1.msra.mxu0 0.0
    %439 = vmatprep.subr.mxu0 0.0
    %440 = vmatpush1.msra.mxu0 0.0
    %441 = vmatprep.subr.mxu0 0.0
    %442 = vmatpush1.msra.mxu0 0.0
    %443 = vmatprep.subr.mxu0 0.0
    %444 = vmatpush1.msra.mxu0 0.0
    %445 = vmatprep.subr.mxu0 0.0
    %446 = vmatpush1.msra.mxu0 0.0
    %447 = vmatprep.subr.mxu0 0.0
    %448 = vmatpush1.msra.mxu0 0.0
    %449 = vmatprep.subr.mxu0 0.0
    %450 = vmatpush1.msra.mxu0 0.0
    %451 = vmatprep.subr.mxu0 0.0
    %452 = vmatpush1.msra.mxu0 0.0
    %453 = vmatprep.subr.mxu0 0.0
    %454 = vmatpush1.msra.mxu0 0.0
    %455 = vmatprep.subr.mxu0 0.0
    %456 = vmatpush1.msra.mxu0 0.0
    %457 = vmatprep.subr.mxu0 0.0
    %458 = vmatpush1.msra.mxu0 0.0
    %459 = vmatprep.subr.mxu0 0.0
    %460 = vmatpush1.msra.mxu0 0.0
    %461 = vmatprep.subr.mxu0 0.0
    %462 = vmatpush1.msra.mxu0 0.0
    %463 = vmatprep.subr.mxu0 0.0
    %464 = vmatpush1.msra.mxu0 0.0
    %465 = vmatprep.subr.mxu0 0.0
    %466 = vmatpush1.msra.mxu0 0.0
    %467 = vmatprep.subr.mxu0 0.0
    %468 = vmatpush1.msra.mxu0 0.0
    %469 = vmatprep.subr.mxu0 0.0
    %470 = vmatpush1.msra.mxu0 0.0
    %471 = vmatprep.subr.mxu0 0.0
    %472 = vmatpush1.msra.mxu0 0.0
    %473 = vmatprep.subr.mxu0 0.0
    %474 = vmatpush1.msra.mxu0 0.0
    %475 = vmatprep.subr.mxu0 0.0
    %476 = vmatpush1.msra.mxu0 0.0
    %477 = vmatprep.subr.mxu0 0.0
    %478 = vmatpush1.msra.mxu0 0.0
    %479 = vmatprep.mubr.f32.mxu0 0.0
    %480 = vmatmul.mubr.f32.gmra.mrb[0].mxu0 %v410
    %v481 = vpop.f32.mrb[0].mxu0
    %v482 = vadd.f32 %v402, %v481
    %v483 = vpop.f32.mrb[0].mxu0
    %484 = vmatprep.mubr.f32.mxu0 0.0
    %485 = vmatmul.mubr.f32.gmra.mrb[0].mxu0 %v413
    %v486 = vpop.f32.mrb[0].mxu0
    %v487 = vadd.f32 %v407, %v486
    %v488 = vpop.f32.mrb[0].mxu0
    %489 = vdwg.mxu0
    %v490 = vmul.f32 %v482, 0.5
    %v491 = vmul.f32 %v487, 0.5
    %v492 = vmul.f32 %v482, 0.044715
    %v493 = vmul.f32 %v487, 0.044715
    %v494 = vmul.f32 %v492, %v482
    %v495 = vmul.f32 %v493, %v487
    %v496 = vmul.f32 %v494, %v482
    %v497 = vmul.f32 %v495, %v487
    %v498 = vadd.f32 %v482, %v496
    %v499 = vadd.f32 %v487, %v497
    %v500 = vmul.f32 %v498, 0.7978846
    %v501 = vmul.f32 %v499, 0.7978846
    %v502 = vtanh.pop %v500
    %v503 = vtanh.pop %v501
    %v504 = vadd.f32 %v502, 1.0
    %v505 = vadd.f32 %v503, 1.0
    %v506 = vmul.f32 %v490, %v504
    %v507 = vmul.f32 %v491, %v505
    %509 = vset.pattern.permute.xlu0 0
    %510 = vperm.xlu0 %509, %v397
    %v511 = vpop.permute.xlu0 %510
    %514 = vset.pattern.permute.xlu0 0
    %515 = vperm.xlu0 %514, %v398
    %v516 = vpop.permute.xlu0 %515
    %vm518 = vcmask 130048
    %v520 = vsel %vm518, %v395, 0
    %v523 = vsel %vm518, %v396, 0
    %525 = vmatprep.subr.mxu0 0.0
    %526 = vmatpush1.msra.mxu0 %v506
    %527 = vmatprep.subr.mxu0 0.0
    %528 = vmatpush1.msra.mxu0 %v507
    %529 = vmatprep.subr.mxu0 0.0
    %530 = vmatpush1.msra.mxu0 0.0
    %531 = vmatprep.subr.mxu0 0.0
    %532 = vmatpush1.msra.mxu0 0.0
    %533 = vmatprep.subr.mxu0 0.0
    %534 = vmatpush1.msra.mxu0 0.0
    %535 = vmatprep.subr.mxu0 0.0
    %536 = vmatpush1.msra.mxu0 0.0
    %537 = vmatprep.subr.mxu0 0.0
    %538 = vmatpush1.msra.mxu0 0.0
    %539 = vmatprep.subr.mxu0 0.0
    %540 = vmatpush1.msra.mxu0 0.0
    %541 = vmatprep.subr.mxu0 0.0
    %542 = vmatpush1.msra.mxu0 0.0
    %543 = vmatprep.subr.mxu0 0.0
    %544 = vmatpush1.msra.mxu0 0.0
    %545 = vmatprep.subr.mxu0 0.0
    %546 = vmatpush1.msra.mxu0 0.0
    %547 = vmatprep.subr.mxu0 0.0
    %548 = vmatpush1.msra.mxu0 0.0
    %549 = vmatprep.subr.mxu0 0.0
    %550 = vmatpush1.msra.mxu0 0.0
    %551 = vmatprep.subr.mxu0 0.0
    %552 = vmatpush1.msra.mxu0 0.0
    %553 = vmatprep.subr.mxu0 0.0
    %554 = vmatpush1.msra.mxu0 0.0
    %555 = vmatprep.subr.mxu0 0.0
    %556 = vmatpush1.msra.mxu0 0.0
    %557 = vmatprep.subr.mxu0 0.0
    %558 = vmatpush1.msra.mxu0 0.0
    %559 = vmatprep.subr.mxu0 0.0
    %560 = vmatpush1.msra.mxu0 0.0
    %561 = vmatprep.subr.mxu0 0.0
    %562 = vmatpush1.msra.mxu0 0.0
    %563 = vmatprep.subr.mxu0 0.0
    %564 = vmatpush1.msra.mxu0 0.0
    %565 = vmatprep.subr.mxu0 0.0
    %566 = vmatpush1.msra.mxu0 0.0
    %567 = vmatprep.subr.mxu0 0.0
    %568 = vmatpush1.msra.mxu0 0.0
    %569 = vmatprep.subr.mxu0 0.0
    %570 = vmatpush1.msra.mxu0 0.0
    %571 = vmatprep.subr.mxu0 0.0
    %572 = vmatpush1.msra.mxu0 0.0
    %573 = vmatprep.subr.mxu0 0.0
    %574 = vmatpush1.msra.mxu0 0.0
    %575 = vmatprep.subr.mxu0 0.0
    %576 = vmatpush1.msra.mxu0 0.0
    %577 = vmatprep.subr.mxu0 0.0
    %578 = vmatpush1.msra.mxu0 0.0
    %579 = vmatprep.subr.mxu0 0.0
    %580 = vmatpush1.msra.mxu0 0.0
    %581 = vmatprep.subr.mxu0 0.0
    %582 = vmatpush1.msra.mxu0 0.0
    %583 = vmatprep.subr.mxu0 0.0
    %584 = vmatpush1.msra.mxu0 0.0
    %585 = vmatprep.subr.mxu0 0.0
    %586 = vmatpush1.msra.mxu0 0.0
    %587 = vmatprep.subr.mxu0 0.0
    %588 = vmatpush1.msra.mxu0 0.0
    %589 = vmatprep.mubr.f32.mxu0 0.0
    %590 = vmatmul.mubr.f32.gmra.mrb[0].mxu0 %v520
    %v591 = vpop.f32.mrb[0].mxu0
    %v592 = vadd.f32 %v511, %v591
    %v593 = vpop.f32.mrb[0].mxu0
    %594 = vmatprep.mubr.f32.mxu0 0.0
    %595 = vmatmul.mubr.f32.gmra.mrb[0].mxu0 %v523
    %v596 = vpop.f32.mrb[0].mxu0
    %v597 = vadd.f32 %v516, %v596
    %v598 = vpop.f32.mrb[0].mxu0
    %599 = vdwg.mxu0
    %v600 = vld [vmem:[#allocation2] sm:$0xff]
    %v601 = vld [vmem:[#allocation2 + $0x8] sm:$0xff]
    %v602 = vadd.f32 %v600, %v592
    %v603 = vadd.f32 %v601, %v597
    %604 = vst [vmem:[#allocation9] sm:$0xff] %v602
    %605 = vst [vmem:[#allocation9 + $0x8] sm:$0xff] %v603
    // Predicated region
    $region58: #{tpu_custom_call.1} parent=1 // pred_check
      _
    $region59: #{tpu_custom_call.1} parent=1 // pred_check_branch
      %607 = sbr.rel (0) target = $region61
    $region60: #{tpu_custom_call.1} parent=1 // pred_region
      %s609 = ssub.s32 512, 512
      %610 = vsyncadd [#allocation4], %s609
      %s611 = sshll.u32 [#allocation8], 4
      %s612 = int_to_ptr.vmem [resolvable:$true] %s611
      %617 = dma.vmem_to_hbm [thread:$0]  %s612, 512, %s11, [#allocation4], 128, 128, 8
    $region61: #{tpu_custom_call.1} parent=1 // pred_fallthru
      _
    // Predicated region
    $region62: #{tpu_custom_call.1} parent=1 // pred_check
      _
    $region63: #{tpu_custom_call.1} parent=1 // pred_check_branch
      %619 = sbr.rel (0) target = $region65
    $region64: #{tpu_custom_call.1} parent=1 // pred_region
      %s621 = ssub.s32 256, 256
      %622 = vsyncadd [#allocation10], %s621
      %s623 = sshll.u32 [#allocation9], 4
      %s624 = int_to_ptr.vmem [resolvable:$true] %s623
      %629 = dma.vmem_to_hbm [thread:$0]  %s624, 256, %s12, [#allocation10], 128, 128, 8
    $region65: #{tpu_custom_call.1} parent=1 // pred_fallthru
      _
    // Predicated region
    $region66: #{tpu_custom_call.1} parent=1 // pred_check
      _
    $region67: #{tpu_custom_call.1} parent=1 // pred_check_branch
      %631 = sbr.rel (0) target = $region69
    $region68: #{tpu_custom_call.1} parent=1 // pred_region
      %632 = dma.done [#allocation4], 512
    $region69: #{tpu_custom_call.1} parent=1 // pred_fallthru
      _
    // Predicated region
    $region70: #{tpu_custom_call.1} parent=1 // pred_check
      _
    $region71: #{tpu_custom_call.1} parent=1 // pred_check_branch
      %634 = sbr.rel (0) target = $region73
    $region72: #{tpu_custom_call.1} parent=1 // pred_region
      %635 = dma.done [#allocation10], 256
    $region73: #{tpu_custom_call.1} parent=1 // pred_fallthru
      _
    %636 = vsyncpa [#allocation3], 1
    %637 = vsyncpa [#allocation6], 1
    %638 = vsyncpa [#allocation4], 1
    %639 = vsyncpa [#allocation10], 1

</llo_original>
